<compile_context>
chip_gen: v7x
topology: tpu7x:2x2x1
jax: 0.10.0
libtpu: 0.0.40
codegen_flags: <defaults>
</compile_context>

<pallas_src>
import functools

import jax
import jax.numpy as jnp
from jax import lax
from jax.experimental import pallas as pl
from jax.experimental.pallas import tpu as pltpu


# ----------------------------- kernel body -----------------------------

def _cosine_distance_kernel(x1_ref, x2_ref, w_ref, o_ref,
                            w12_acc, w1_acc, w2_acc, *, eps, precision):
    n = pl.program_id(1)

    @pl.when(n == 0)
    def _init():
        w12_acc[...] = jnp.zeros_like(w12_acc)
        w1_acc[...] = jnp.zeros_like(w1_acc)
        w2_acc[...] = jnp.zeros_like(w2_acc)

    # Projection chunk on the MXU, operands in their native dtype, f32 accumulate:
    #   y2[:, n*TN:(n+1)*TN] = x2 @ W[n*TN:(n+1)*TN, :].T      (trans-B dot_general)
    y2 = lax.dot_general(
        x2_ref[...], w_ref[...],
        dimension_numbers=(((1,), (1,)), ((), ())),
        preferred_element_type=jnp.float32,
        precision=precision)                                     # (TB, TN) f32

    x1 = x1_ref[...].astype(jnp.float32)                         # (TB, TN) f32

    # Row-wise partial sums: VPU products + XLU lane reductions, exact f32.
    # Deliberately NOT matmuls: keeps the MXU free for the projection matmul and
    # avoids any low-precision demotion of the reductions.
    w12_acc[...] += jnp.sum(x1 * y2, axis=-1, keepdims=True)     # (TB, 1)
    w1_acc[...] += jnp.sum(x1 * x1, axis=-1, keepdims=True)
    w2_acc[...] += jnp.sum(y2 * y2, axis=-1, keepdims=True)

    @pl.when(n == pl.num_programs(1) - 1)
    def _finalize():
        denom2 = jnp.maximum(w1_acc[...] * w2_acc[...], eps * eps)  # ATen eps clamp
        # rsqrt lands on the EUP slot (effectively free next to the matmul).
        o_ref[...] = -(w12_acc[...] * lax.rsqrt(denom2))


# --------------------------- tiling / padding ---------------------------

def _round_up(x, m):
    return ((x + m - 1) // m) * m


def _sublane(itemsize):
    # native sublane multiple per element width (packed dtypes travel in pairs/quads)
    return {4: 8, 2: 16, 1: 32}.get(int(itemsize), 8)


def _vmem_capacity_bytes():
    try:
        info = pltpu.get_tpu_info()
        for name in ("vmem_capacity_bytes", "vmem_bytes", "vmem_size_bytes"):
            v = getattr(info, name, None)
            if v:
                return int(v)
    except Exception:
        pass
    return 64 << 20   # conservative: v7x per-TensorCore VMEM


def _choose_tiles(B, H, x1_bytes, x2_bytes, w_bytes, budget):
    """Pick (TB, TN, B_pad, H_pad) under a VMEM byte budget."""
    sub = max(_sublane(x1_bytes), _sublane(x2_bytes))
    B_al = _round_up(B, sub)
    H_al = _round_up(H, 128)

    def usage(tb, tn, hp):
        return (2 * tb * tn * x1_bytes        # x1 chunk (double-buffered)
                + 2 * tb * hp * x2_bytes      # x2 full-row block (double-buffered)
                + 2 * tn * hp * w_bytes       # weight row-chunk (double-buffered)
                + 2 * tb * 4                  # output block
                + 4 * tb * 4                  # f32 row accumulators
                + 3 * tb * tn * 4)            # in-kernel f32 temporaries (y2, products)

    tb_cands = sorted({t for t in (1024, 512, 256, 128, 64, 32, 16, 8)
                       if t % sub == 0 and t < B_al} | {B_al}, reverse=True)
    tn_cands = sorted({t for t in (4096, 2048, 1024, 512, 256, 128)
                       if t < H_al} | {H_al}, reverse=True)

    # Preferred layout: whole (padded) weight is a single block -> constant block
    # index -> DMA'd from HBM exactly once for the entire grid.
    for tb in tb_cands:
        if usage(tb, H_al, H_al) <= budget:
            # Megacore: if this leaves a single batch tile, split it in two so the
            # "parallel" axis can shard across TensorCores (free here: weight traffic
            # does not depend on the number of batch tiles in this layout).
            if tb == B_al and B_al >= 128 and B_al >= 2 * sub:
                tb = _round_up((B_al + 1) // 2, sub)
            return tb, H_al, _round_up(B_al, tb), H_al

    # Weight does not fit as one block: chunk its rows.  Weight is then re-streamed
    # once per batch tile, so prioritise the largest TB the budget allows (arithmetic
    # intensity vs. weight traffic scales with TB -> clears the v6e HBM roofline),
    # then the largest TN (fewer grid steps).
    # TODO(synk): a flipped (NC outer, G inner) grid with a persistent per-batch
    # accumulator would stream W exactly once even here, at the cost of re-streaming
    # x2; worthwhile when H >> B.
    for tb in tb_cands:
        for tn in tn_cands:
            hp = _round_up(H_al, tn)
            if usage(tb, tn, hp) <= budget:
                return tb, tn, _round_up(B_al, tb), hp

    # TODO(synk): chunk the contraction (H) dimension of x2 with a 3-D grid for hidden
    # sizes so large that even the smallest (TB, TN) does not fit the budget.
    tb, tn = tb_cands[-1], 128
    return tb, tn, _round_up(B_al, tb), _round_up(H_al, tn)


def _pad2(a, rows, cols):
    r, c = a.shape
    if r == rows and c == cols:
        return a
    return jnp.pad(a, ((0, rows - r), (0, cols - c)))


# ------------------------------ wrappers ------------------------------

def cosine_distance(x1, x2, weight, *, dim=1, keepdim=False, eps=1e-10,
                    matmul_dtype=None, precision=None):
    """Pallas CosineDistance.forward for 2-D (B, H) inputs, reduction along dim=1."""
    assert dim == 1, "kernel is written for the (B, H), dim=1 convention"
    assert x1.ndim == 2 and x1.shape == x2.shape
    B, H = x1.shape
    assert weight.shape == (H, H)

    out_dtype = x1.dtype
    if matmul_dtype is not None:
        # v5e knob: f32 projection matmuls are multi-pass on the MXU; bf16 operands
        # with f32 accumulation recover full MXU rate.
        x2 = x2.astype(matmul_dtype)
        weight = weight.astype(matmul_dtype)
    elif weight.dtype != x2.dtype:
        weight = weight.astype(x2.dtype)

    vmem_cap = _vmem_capacity_bytes()
    vmem_limit = max(min(vmem_cap - (8 << 20), 100 << 20), 24 << 20)
    block_budget = int(vmem_limit * 0.85)

    TB, TN, B_pad, H_pad = _choose_tiles(
        B, H, x1.dtype.itemsize, x2.dtype.itemsize, weight.dtype.itemsize,
        block_budget)
    G, NC = B_pad // TB, H_pad // TN

    # Zero padding is mathematically neutral here: padded columns/rows of x1/x2/W
    # contribute 0 to every sum, and padded batch rows give cos = 0 and are sliced off.
    x1p = _pad2(x1, B_pad, H_pad)
    x2p = _pad2(x2, B_pad, H_pad)
    wp = _pad2(weight, H_pad, H_pad)

    w_passes = 1 if NC == 1 else G
    flops = 2 * B_pad * H_pad * H_pad + 8 * B_pad * H_pad
    bytes_accessed = (x1p.size * x1p.dtype.itemsize
                      + x2p.size * x2p.dtype.itemsize
                      + w_passes * wp.size * wp.dtype.itemsize
                      + B_pad * 4)

    out = pl.pallas_call(
        functools.partial(_cosine_distance_kernel, eps=eps, precision=precision),
        out_shape=jax.ShapeDtypeStruct((B_pad, 1), jnp.float32),
        grid_spec=pltpu.PrefetchScalarGridSpec(
            num_scalar_prefetch=0,
            grid=(G, NC),
            in_specs=[
                pl.BlockSpec((TB, TN), lambda i, n: (i, n)),      # x1 feature chunk
                pl.BlockSpec((TB, H_pad), lambda i, n: (i, 0)),   # x2 full rows (reused over n)
                pl.BlockSpec((TN, H_pad), lambda i, n: (n, 0)),   # W row-chunk, untransposed
            ],
            out_specs=pl.BlockSpec((TB, 1), lambda i, n: (i, 0)),
            scratch_shapes=[pltpu.VMEM((TB, 1), jnp.float32)] * 3,
        ),
        compiler_params=pltpu.CompilerParams(
            dimension_semantics=("parallel", "arbitrary"),
            vmem_limit_bytes=int(vmem_limit),
        ),
        cost_estimate=pl.CostEstimate(
            flops=flops, transcendentals=B_pad, bytes_accessed=bytes_accessed),
    )(x1p, x2p, wp)

    dist = out[:B, 0].astype(out_dtype)
    if keepdim:
        dist = dist[:, None]
    return dist


def local_contrastive_loss(query, suspect_logits, weight, *, reduction=True,
                           regularization=False, eps=1e-10,
                           matmul_dtype=None, precision=None):
    """LocalContrastiveLoss.forward with SphereDistance(CosineDistance) as the distance."""
    # SphereDistance just forwards; torch.pow(d, 1) is the identity.
    # keepdim=True so distance.sum(1) (as written in the torch module) is well-defined.
    distance = cosine_distance(query, suspect_logits, weight, dim=1, keepdim=True,
                               eps=eps, matmul_dtype=matmul_dtype,
                               precision=precision)              # (B, 1)
    if not reduction:
        return distance
    contrast_loss = jnp.mean(jnp.sum(distance, axis=1))
    if regularization:
        # Tiny cross-batch reductions: done in plain XLA on purpose (launch overhead
        # of a dedicated pallas_call would dominate).  torch .var(dim=0) is unbiased.
        std_x = jnp.sqrt(jnp.var(query, axis=0, ddof=1) + 1e-4)
        std_y = jnp.sqrt(jnp.var(suspect_logits, axis=0, ddof=1) + 1e-4)
        contrast_loss = (contrast_loss
                         + jnp.mean(jax.nn.relu(1.0 - std_x)) / 2
                         + jnp.mean(jax.nn.relu(1.0 - std_y)) / 2)
    return contrast_loss


# ------------------------- pure-JAX references -------------------------

def _reference_distance(x1, x2, weight, eps=1e-10):
    y2 = x2.astype(jnp.float32) @ weight.astype(jnp.float32).T
    x1f = x1.astype(jnp.float32)
    w12 = jnp.sum(x1f * y2, axis=1)
    w1 = jnp.sum(x1f * x1f, axis=1)
    w2 = jnp.sum(y2 * y2, axis=1)
    return -(w12 / jnp.sqrt(jnp.maximum(w1 * w2, eps * eps)))


def _reference_loss(query, suspect, weight, reduction=True, regularization=False):
    d = _reference_distance(query, suspect, weight)[:, None]
    if not reduction:
        return d
    loss = jnp.mean(jnp.sum(d, axis=1))
    if regularization:
        std_x = jnp.sqrt(jnp.var(query, axis=0, ddof=1) + 1e-4)
        std_y = jnp.sqrt(jnp.var(suspect, axis=0, ddof=1) + 1e-4)
        loss = (loss + jnp.mean(jax.nn.relu(1.0 - std_x)) / 2
                + jnp.mean(jax.nn.relu(1.0 - std_y)) / 2)
    return loss


if __name__ == "__main__":
    B, H = 8, 32  # batch=8, hidden=32

    key = jax.random.PRNGKey(0)
    k1, k2, kw = jax.random.split(key, 3)
    query = jax.random.normal(k1, (B, H), dtype=jnp.float32)
    suspect = jax.random.normal(k2, (B, H), dtype=jnp.float32)
    # Deterministic Linear(hidden, hidden, bias=False) weight, shape (out, in) = (H, H).
    bound = 1.0 / (H ** 0.5)
    weight = jax.random.uniform(kw, (H, H), dtype=jnp.float32,
                                minval=-bound, maxval=bound)

    # Distance kernel.
    dist = cosine_distance(query, suspect, weight, dim=1, keepdim=False)
    jax.block_until_ready(dist)
    ref_dist = _reference_distance(query, suspect, weight)
    assert dist.shape == (B,)
    assert jnp.allclose(dist, ref_dist, atol=1e-4, rtol=1e-4)

    # Full LocalContrastiveLoss forward (reduction + regularization).
    loss = local_contrastive_loss(query, suspect, weight,
                                  reduction=True, regularization=True)
    jax.block_until_ready(loss)
    ref_loss = _reference_loss(query, suspect, weight,
                               reduction=True, regularization=True)
    assert jnp.allclose(loss, ref_loss, atol=1e-4, rtol=1e-4)

    # reduction=False path returns the raw (B, 1) distances.
    d_raw = local_contrastive_loss(query, suspect, weight, reduction=False)
    jax.block_until_ready(d_raw)
    assert d_raw.shape == (B, 1)
    assert jnp.allclose(d_raw[:, 0], ref_dist, atol=1e-4, rtol=1e-4)

    # Ragged shapes exercise the zero-padding path (B, H not multiples of 8 / 128).
    Br, Hr = 5, 20
    kq, ks, kwr = jax.random.split(jax.random.PRNGKey(1), 3)
    q_r = jax.random.normal(kq, (Br, Hr), dtype=jnp.float32)
    s_r = jax.random.normal(ks, (Br, Hr), dtype=jnp.float32)
    w_r = jax.random.uniform(kwr, (Hr, Hr), dtype=jnp.float32,
                             minval=-1.0 / (Hr ** 0.5), maxval=1.0 / (Hr ** 0.5))
    d_r = cosine_distance(q_r, s_r, w_r)
    jax.block_until_ready(d_r)
    assert d_r.shape == (Br,)
    assert jnp.allclose(d_r, _reference_distance(q_r, s_r, w_r), atol=1e-4, rtol=1e-4)

    print("KERNEL_OK")
</pallas_src>

<mosaic_0001>
module attributes {stable_mosaic.version = 11 : i64} {
  func.func @_cosine_distance_kernel(%arg0: i32, %arg1: i32, %arg2: memref<8x128xf32, #tpu.memory_space<vmem>>, %arg3: memref<8x128xf32, #tpu.memory_space<vmem>>, %arg4: memref<128x128xf32, #tpu.memory_space<vmem>>, %arg5: memref<8x1xf32, #tpu.memory_space<vmem>>, %arg6: memref<8x1xf32, #tpu.memory_space<vmem>>, %arg7: memref<8x1xf32, #tpu.memory_space<vmem>>, %arg8: memref<8x1xf32, #tpu.memory_space<vmem>>) attributes {dimension_semantics = [#tpu.dimension_semantics<parallel>, #tpu.dimension_semantics<arbitrary>], iteration_bounds = array<i64: 1, 1>, scalar_prefetch = 0 : i64, scratch_operands = 3 : i64, tpu.core_type = #tpu.core_type<tc>, window_params = [{transform_indices = @transform_0, window_bounds = array<i64: 8, 128>}, {transform_indices = @transform_1, window_bounds = array<i64: 8, 128>}, {transform_indices = @transform_2, window_bounds = array<i64: 128, 128>}, {transform_indices = @transform_3, window_bounds = array<i64: 8, 1>}]} {
    %c0_i32 = arith.constant 0 : i32
    %0 = arith.cmpi eq, %arg1, %c0_i32 : i32
    %1 = arith.extui %0 : i1 to i32
    %c0_i32_0 = arith.constant 0 : i32
    %2 = arith.cmpi ne, %1, %c0_i32_0 : i32
    scf.if %2 {
      %cst_23 = arith.constant 0.000000e+00 : f32
      %28 = vector.broadcast %cst_23 : f32 to vector<8x1xf32>
      %c0_24 = arith.constant 0 : index
      %c0_25 = arith.constant 0 : index
      %29 = vector.load %arg6[%c0_24, %c0_25] : memref<8x1xf32, #tpu.memory_space<vmem>>, vector<8x1xf32>
      tpu.vector_store %arg6[%c0_24, %c0_25], %28 {strides = array<i32>} : memref<8x1xf32, #tpu.memory_space<vmem>>, vector<8x1xf32>,
      %cst_26 = arith.constant 0.000000e+00 : f32
      %30 = vector.broadcast %cst_26 : f32 to vector<8x1xf32>
      %c0_27 = arith.constant 0 : index
      %c0_28 = arith.constant 0 : index
      %31 = vector.load %arg7[%c0_27, %c0_28] : memref<8x1xf32, #tpu.memory_space<vmem>>, vector<8x1xf32>
      tpu.vector_store %arg7[%c0_27, %c0_28], %30 {strides = array<i32>} : memref<8x1xf32, #tpu.memory_space<vmem>>, vector<8x1xf32>,
      %cst_29 = arith.constant 0.000000e+00 : f32
      %32 = vector.broadcast %cst_29 : f32 to vector<8x1xf32>
      %c0_30 = arith.constant 0 : index
      %c0_31 = arith.constant 0 : index
      %33 = vector.load %arg8[%c0_30, %c0_31] : memref<8x1xf32, #tpu.memory_space<vmem>>, vector<8x1xf32>
      tpu.vector_store %arg8[%c0_30, %c0_31], %32 {strides = array<i32>} : memref<8x1xf32, #tpu.memory_space<vmem>>, vector<8x1xf32>,
    } else {
    }
    %c0 = arith.constant 0 : index
    %c0_1 = arith.constant 0 : index
    %3 = vector.load %arg3[%c0, %c0_1] : memref<8x128xf32, #tpu.memory_space<vmem>>, vector<8x128xf32>
    %c0_2 = arith.constant 0 : index
    %c0_3 = arith.constant 0 : index
    %4 = vector.load %arg4[%c0_2, %c0_3] : memref<128x128xf32, #tpu.memory_space<vmem>>, vector<128x128xf32>
    %cst = arith.constant dense<0.000000e+00> : vector<8x128xf32>
    %5 = tpu.matmul %3, %4, %cst {dimension_numbers = #tpu.dot_dimension_numbers<[1], [1], [0], [0], [0, 0, 1, 0], [], []>} : vector<8x128xf32>, vector<128x128xf32>, vector<8x128xf32> -> vector<8x128xf32>
    %c0_4 = arith.constant 0 : index
    %c0_5 = arith.constant 0 : index
    %6 = vector.load %arg2[%c0_4, %c0_5] : memref<8x128xf32, #tpu.memory_space<vmem>>, vector<8x128xf32>
    %c0_6 = arith.constant 0 : index
    %c0_7 = arith.constant 0 : index
    %7 = vector.load %arg6[%c0_6, %c0_7] : memref<8x1xf32, #tpu.memory_space<vmem>>, vector<8x1xf32>
    %8 = arith.mulf %6, %5 : vector<8x128xf32>
    %cst_8 = arith.constant dense<0.000000e+00> : vector<8xf32>
    %9 = vector.multi_reduction <add>, %8, %cst_8 [1] : vector<8x128xf32> to vector<8xf32>
    %10 = vector.shape_cast %9 : vector<8xf32> to vector<8x1xf32>
    %11 = arith.addf %7, %10 : vector<8x1xf32>
    %c0_9 = arith.constant 0 : index
    %c0_10 = arith.constant 0 : index
    %12 = vector.load %arg6[%c0_9, %c0_10] : memref<8x1xf32, #tpu.memory_space<vmem>>, vector<8x1xf32>
    tpu.vector_store %arg6[%c0_9, %c0_10], %11 {strides = array<i32>} : memref<8x1xf32, #tpu.memory_space<vmem>>, vector<8x1xf32>,
    %c0_11 = arith.constant 0 : index
    %c0_12 = arith.constant 0 : index
    %13 = vector.load %arg7[%c0_11, %c0_12] : memref<8x1xf32, #tpu.memory_space<vmem>>, vector<8x1xf32>
    %14 = arith.mulf %6, %6 : vector<8x128xf32>
    %cst_13 = arith.constant dense<0.000000e+00> : vector<8xf32>
    %15 = vector.multi_reduction <add>, %14, %cst_13 [1] : vector<8x128xf32> to vector<8xf32>
    %16 = vector.shape_cast %15 : vector<8xf32> to vector<8x1xf32>
    %17 = arith.addf %13, %16 : vector<8x1xf32>
    %c0_14 = arith.constant 0 : index
    %c0_15 = arith.constant 0 : index
    %18 = vector.load %arg7[%c0_14, %c0_15] : memref<8x1xf32, #tpu.memory_space<vmem>>, vector<8x1xf32>
    tpu.vector_store %arg7[%c0_14, %c0_15], %17 {strides = array<i32>} : memref<8x1xf32, #tpu.memory_space<vmem>>, vector<8x1xf32>,
    %c0_16 = arith.constant 0 : index
    %c0_17 = arith.constant 0 : index
    %19 = vector.load %arg8[%c0_16, %c0_17] : memref<8x1xf32, #tpu.memory_space<vmem>>, vector<8x1xf32>
    %20 = arith.mulf %5, %5 : vector<8x128xf32>
    %cst_18 = arith.constant dense<0.000000e+00> : vector<8xf32>
    %21 = vector.multi_reduction <add>, %20, %cst_18 [1] : vector<8x128xf32> to vector<8xf32>
    %22 = vector.shape_cast %21 : vector<8xf32> to vector<8x1xf32>
    %23 = arith.addf %19, %22 : vector<8x1xf32>
    %c0_19 = arith.constant 0 : index
    %c0_20 = arith.constant 0 : index
    %24 = vector.load %arg8[%c0_19, %c0_20] : memref<8x1xf32, #tpu.memory_space<vmem>>, vector<8x1xf32>
    tpu.vector_store %arg8[%c0_19, %c0_20], %23 {strides = array<i32>} : memref<8x1xf32, #tpu.memory_space<vmem>>, vector<8x1xf32>,
    %c0_i32_21 = arith.constant 0 : i32
    %25 = arith.cmpi eq, %arg1, %c0_i32_21 : i32
    %26 = arith.extui %25 : i1 to i32
    %c0_i32_22 = arith.constant 0 : i32
    %27 = arith.cmpi ne, %26, %c0_i32_22 : i32
    scf.if %27 {
      %c0_23 = arith.constant 0 : index
      %c0_24 = arith.constant 0 : index
      %28 = vector.load %arg7[%c0_23, %c0_24] : memref<8x1xf32, #tpu.memory_space<vmem>>, vector<8x1xf32>
      %c0_25 = arith.constant 0 : index
      %c0_26 = arith.constant 0 : index
      %29 = vector.load %arg8[%c0_25, %c0_26] : memref<8x1xf32, #tpu.memory_space<vmem>>, vector<8x1xf32>
      %30 = arith.mulf %28, %29 : vector<8x1xf32>
      %cst_27 = arith.constant 9.99999968E-21 : f32
      %31 = vector.broadcast %cst_27 : f32 to vector<8x1xf32>
      %32 = arith.maximumf %30, %31 : vector<8x1xf32>
      %c0_28 = arith.constant 0 : index
      %c0_29 = arith.constant 0 : index
      %33 = vector.load %arg6[%c0_28, %c0_29] : memref<8x1xf32, #tpu.memory_space<vmem>>, vector<8x1xf32>
      %34 = math.rsqrt %32 : vector<8x1xf32>
      %35 = arith.mulf %33, %34 : vector<8x1xf32>
      %cst_30 = arith.constant 0.000000e+00 : f32
      %36 = vector.broadcast %cst_30 : f32 to vector<8x1xf32>
      %37 = arith.subf %36, %35 : vector<8x1xf32>
      %c0_31 = arith.constant 0 : index
      %c0_32 = arith.constant 0 : index
      %38 = vector.load %arg5[%c0_31, %c0_32] : memref<8x1xf32, #tpu.memory_space<vmem>>, vector<8x1xf32>
      tpu.vector_store %arg5[%c0_31, %c0_32], %37 {strides = array<i32>} : memref<8x1xf32, #tpu.memory_space<vmem>>, vector<8x1xf32>,
    } else {
    }
    return
  }
  func.func @transform_0(%arg0: i32, %arg1: i32) -> (i32, i32) {
    %c0_i32 = arith.constant 0 : i32
    return %arg0, %arg1 : i32, i32
  }
  func.func @transform_1(%arg0: i32, %arg1: i32) -> (i32, i32) {
    %c0_i32 = arith.constant 0 : i32
    %c0_i32_0 = arith.constant 0 : i32
    return %arg0, %c0_i32 : i32, i32
  }
  func.func @transform_2(%arg0: i32, %arg1: i32) -> (i32, i32) {
    %c0_i32 = arith.constant 0 : i32
    %c0_i32_0 = arith.constant 0 : i32
    return %arg1, %c0_i32 : i32, i32
  }
  func.func @transform_3(%arg0: i32, %arg1: i32) -> (i32, i32) {
    %c0_i32 = arith.constant 0 : i32
    %c0_i32_0 = arith.constant 0 : i32
    return %arg0, %c0_i32 : i32, i32
  }
}

</mosaic_0001>

<llo_original>
// kernel: tpu_custom_call.1
$region0: #{tpu_custom_call.1}
  #allocation0 [shape = 'u32[]', space=smem, size = 0x4, offset = 0x4, fixed_abs, tag = 'smem constant byte address 0x4 - core index']
  #allocation1 [shape = 'u32[144,128]{1,0:T(1,128)}', space=vmem, size = 0x12000, scoped, tag = 'internal scratch']
  #allocation2 [shape = 'f32[8,1]{1,0:T(8,128)}', space=vmem, size = 0x1000, scoped, tag = 'scratch operand']
  #allocation3 [shape = 'f32[8,1]{1,0:T(8,128)}', space=vmem, size = 0x1000, scoped, tag = 'scratch operand']
  #allocation4 [shape = 'f32[8,1]{1,0:T(8,128)}', space=vmem, size = 0x1000, scoped, tag = 'scratch operand']
  %s0 = inlined_call_operand.hbm [shape: f32[8,128], index: 0, kind: input, shape index: {}]
  %s1 = inlined_call_operand.hbm [shape: f32[8,128], index: 1, kind: input, shape index: {}]
  %s2 = inlined_call_operand.hbm [shape: f32[128,128], index: 2, kind: input, shape index: {}]
  %s3 = inlined_call_operand.vmem [shape: f32[8,1], index: 3, kind: output, shape index: {}]
  %s4 = sld [smem:[#allocation0]]
  $region42: #{tpu_custom_call.1} parent=0
    _
  %s6 = ssub.s32 1, %s4
  %s7 = scalar_select 0, %s6, %s4
  $region1: #{tpu_custom_call.1} parent=0
    #allocation5 [shape = 'u8[4096]{0}', space=vmem, size = 0x1000, scoped, tag = 'input window, operand 0, single buffered']
    #allocation6 [shape = 's32[1]{0}', space=sflag, size = 0x4, scoped, tag = 'scoped memory for tpu_custom_call.1']
    #allocation7 [shape = 'u8[4096]{0}', space=vmem, size = 0x1000, scoped, tag = 'input window, operand 1, single buffered']
    #allocation8 [shape = 's32[1]{0}', space=sflag, size = 0x4, scoped, tag = 'scoped memory for tpu_custom_call.1']
    #allocation9 [shape = 'u8[65536]{0}', space=vmem, size = 0x10000, scoped, tag = 'input window, operand 2, single buffered']
    %8 = vsyncpa [#allocation6], 0
    %9 = vsyncpa [#allocation8], 0
    // Predicated region
    $region2: #{tpu_custom_call.1} parent=1 // pred_check
      _
    $region3: #{tpu_custom_call.1} parent=1 // pred_check_branch
      %11 = sbr.rel (0) target = $region5
    $region4: #{tpu_custom_call.1} parent=1 // pred_region
      %s13 = ssub.s32 128, 128
      %14 = vsyncadd [#allocation6], %s13
      %s16 = sshll.u32 [#allocation5], 4
      %s17 = int_to_ptr.vmem [resolvable:$true] %s16
      %19 = dma.hbm_to_vmem [thread:$0]  %s0, 128, %s17, [#allocation6]
    $region5: #{tpu_custom_call.1} parent=1 // pred_fallthru
      _
    // Predicated region
    $region6: #{tpu_custom_call.1} parent=1 // pred_check
      _
    $region7: #{tpu_custom_call.1} parent=1 // pred_check_branch
      %21 = sbr.rel (0) target = $region9
    $region8: #{tpu_custom_call.1} parent=1 // pred_region
      %s23 = ssub.s32 128, 128
      %24 = vsyncadd [#allocation8], %s23
      %s26 = sshll.u32 [#allocation7], 4
      %s27 = int_to_ptr.vmem [resolvable:$true] %s26
      %29 = dma.hbm_to_vmem [thread:$0]  %s1, 128, %s27, [#allocation8]
    $region9: #{tpu_custom_call.1} parent=1 // pred_fallthru
      _
    // Predicated region
    $region10: #{tpu_custom_call.1} parent=1 // pred_check
      _
    $region11: #{tpu_custom_call.1} parent=1 // pred_check_branch
      %31 = sbr.rel (0) target = $region13
    $region12: #{tpu_custom_call.1} parent=1 // pred_region
      %s33 = ssub.s32 2048, 2048
      %34 = vsyncadd [#allocation8], %s33
      %s35 = sshll.u32 [#allocation9], 4
      %s36 = int_to_ptr.vmem [resolvable:$true] %s35
      %41 = dma.hbm_to_vmem [thread:$0]  %s2, 2048, %s36, [#allocation8], 128, 128, 8
    $region13: #{tpu_custom_call.1} parent=1 // pred_fallthru
      _
    // Predicated region
    $region14: #{tpu_custom_call.1} parent=1 // pred_check
      _
    $region15: #{tpu_custom_call.1} parent=1 // pred_check_branch
      %43 = sbr.rel (0) target = $region17
    $region16: #{tpu_custom_call.1} parent=1 // pred_region
      %44 = dma.done [#allocation6], 128
    $region17: #{tpu_custom_call.1} parent=1 // pred_fallthru
      _
    // Predicated region
    $region18: #{tpu_custom_call.1} parent=1 // pred_check
      _
    $region19: #{tpu_custom_call.1} parent=1 // pred_check_branch
      %46 = sbr.rel (0) target = $region21
    $region20: #{tpu_custom_call.1} parent=1 // pred_region
      %47 = dma.done [#allocation8], 128
    $region21: #{tpu_custom_call.1} parent=1 // pred_fallthru
      _
    // Predicated region
    $region22: #{tpu_custom_call.1} parent=1 // pred_check
      _
    $region23: #{tpu_custom_call.1} parent=1 // pred_check_branch
      %49 = sbr.rel (0) target = $region25
    $region24: #{tpu_custom_call.1} parent=1 // pred_region
      %50 = dma.done [#allocation8], 2048
    $region25: #{tpu_custom_call.1} parent=1 // pred_fallthru
      _
    %p51 = scmp.eq.s32.totalorder 0, 0
    // Predicated region
    $region26: #{tpu_custom_call.1} parent=1 // pred_check
      %p52 = pneg %p51
    $region27: #{tpu_custom_call.1} parent=1 // pred_check_branch
      %54 = sbr.rel (%p52) target = $region29
    $region28: #{tpu_custom_call.1} parent=1 // pred_region
      %vm55 = vcmask 7168
      %56 = vst.msk [vmem:[#allocation2] sm:$0xff] %vm55, 0.0
      %57 = vst.msk [vmem:[#allocation3] sm:$0xff] %vm55, 0.0
      %58 = vst.msk [vmem:[#allocation4] sm:$0xff] %vm55, 0.0
    $region29: #{tpu_custom_call.1} parent=1 // pred_fallthru
      _
    %v59 = vld [vmem:[#allocation7] sm:$0xff]
    %v60 = vld [vmem:[#allocation9] sm:$0xff]
    %v61 = vld [vmem:[#allocation9 + $0x8] sm:$0xff]
    %v62 = vld [vmem:[#allocation9 + $0x10] sm:$0xff]
    %v63 = vld [vmem:[#allocation9 + $0x18] sm:$0xff]
    %v64 = vld [vmem:[#allocation9 + $0x20] sm:$0xff]
    %v65 = vld [vmem:[#allocation9 + $0x28] sm:$0xff]
    %v66 = vld [vmem:[#allocation9 + $0x30] sm:$0xff]
    %v67 = vld [vmem:[#allocation9 + $0x38] sm:$0xff]
    %v68 = vld [vmem:[#allocation9 + $0x40] sm:$0xff]
    %v69 = vld [vmem:[#allocation9 + $0x48] sm:$0xff]
    %v70 = vld [vmem:[#allocation9 + $0x50] sm:$0xff]
    %v71 = vld [vmem:[#allocation9 + $0x58] sm:$0xff]
    %v72 = vld [vmem:[#allocation9 + $0x60] sm:$0xff]
    %v73 = vld [vmem:[#allocation9 + $0x68] sm:$0xff]
    %v74 = vld [vmem:[#allocation9 + $0x70] sm:$0xff]
    %v75 = vld [vmem:[#allocation9 + $0x78] sm:$0xff]
    %76 = vmatprep.subr.mxu0 0.0
    %77 = vmatpush1.xpose.msra.mxu0 %v60
    %78 = vmatprep.subr.mxu0 0.0
    %79 = vmatpush1.xpose.msra.mxu0 %v61
    %80 = vmatprep.subr.mxu0 0.0
    %81 = vmatpush1.xpose.msra.mxu0 %v62
    %82 = vmatprep.subr.mxu0 0.0
    %83 = vmatpush1.xpose.msra.mxu0 %v63
    %84 = vmatprep.subr.mxu0 0.0
    %85 = vmatpush1.xpose.msra.mxu0 %v64
    %86 = vmatprep.subr.mxu0 0.0
    %87 = vmatpush1.xpose.msra.mxu0 %v65
    %88 = vmatprep.subr.mxu0 0.0
    %89 = vmatpush1.xpose.msra.mxu0 %v66
    %90 = vmatprep.subr.mxu0 0.0
    %91 = vmatpush1.xpose.msra.mxu0 %v67
    %92 = vmatprep.subr.mxu0 0.0
    %93 = vmatpush1.xpose.msra.mxu0 %v68
    %94 = vmatprep.subr.mxu0 0.0
    %95 = vmatpush1.xpose.msra.mxu0 %v69
    %96 = vmatprep.subr.mxu0 0.0
    %97 = vmatpush1.xpose.msra.mxu0 %v70
    %98 = vmatprep.subr.mxu0 0.0
    %99 = vmatpush1.xpose.msra.mxu0 %v71
    %100 = vmatprep.subr.mxu0 0.0
    %101 = vmatpush1.xpose.msra.mxu0 %v72
    %102 = vmatprep.subr.mxu0 0.0
    %103 = vmatpush1.xpose.msra.mxu0 %v73
    %104 = vmatprep.subr.mxu0 0.0
    %105 = vmatpush1.xpose.msra.mxu0 %v74
    %106 = vmatprep.subr.mxu0 0.0
    %107 = vmatpush1.xpose.msra.mxu0 %v75
    %108 = vmatprep.subr.mxu0 0.0
    %109 = vmatpush1.xpose.msra.mxu0 0.0
    %110 = vmatprep.subr.mxu0 0.0
    %111 = vmatpush1.xpose.msra.mxu0 0.0
    %112 = vmatprep.subr.mxu0 0.0
    %113 = vmatpush1.xpose.msra.mxu0 0.0
    %114 = vmatprep.subr.mxu0 0.0
    %115 = vmatpush1.xpose.msra.mxu0 0.0
    %116 = vmatprep.subr.mxu0 0.0
    %117 = vmatpush1.xpose.msra.mxu0 0.0
    %118 = vmatprep.subr.mxu0 0.0
    %119 = vmatpush1.xpose.msra.mxu0 0.0
    %120 = vmatprep.subr.mxu0 0.0
    %121 = vmatpush1.xpose.msra.mxu0 0.0
    %122 = vmatprep.subr.mxu0 0.0
    %123 = vmatpush1.xpose.msra.mxu0 0.0
    %124 = vmatprep.subr.mxu0 0.0
    %125 = vmatpush1.xpose.msra.mxu0 0.0
    %126 = vmatprep.subr.mxu0 0.0
    %127 = vmatpush1.xpose.msra.mxu0 0.0
    %128 = vmatprep.subr.mxu0 0.0
    %129 = vmatpush1.xpose.msra.mxu0 0.0
    %130 = vmatprep.subr.mxu0 0.0
    %131 = vmatpush1.xpose.msra.mxu0 0.0
    %132 = vmatprep.subr.mxu0 0.0
    %133 = vmatpush1.xpose.msra.mxu0 0.0
    %134 = vmatprep.subr.mxu0 0.0
    %135 = vmatpush1.xpose.msra.mxu0 0.0
    %136 = vmatprep.subr.mxu0 0.0
    %137 = vmatpush1.xpose.msra.mxu0 0.0
    %138 = vmatprep.subr.mxu0 0.0
    %139 = vmatpush1.xpose.msra.mxu0 0.0
    %140 = vmatprep.mubr.f32.mxu0 0.0
    %141 = vmatmul.mubr.f32.gmra.mrb[0].mxu0 %v59
    %v142 = vpop.f32.mrb[0].mxu0
    %v143 = vadd.f32 0.0, %v142
    %v144 = vpop.f32.mrb[0].mxu0
    %145 = vdwg.mxu0
    %v146 = vld [vmem:[#allocation5] sm:$0xff]
    %v147 = vld [vmem:[#allocation2] sm:$0xff]
    %v148 = vmul.f32 %v146, %v143
    %149 = vadd.xlane.f32.xlu0 %v148
    %v150 = vpop.xlane.xlu0 %149
    %v151 = vadd.f32 %v147, %v150
    %vm152 = vcmask 7168
    %153 = vst.msk [vmem:[#allocation2] sm:$0xff] %vm152, %v151
    %v154 = vld [vmem:[#allocation3] sm:$0xff]
    %v155 = vmul.f32 %v146, %v146
    %156 = vadd.xlane.f32.xlu0 %v155
    %v157 = vpop.xlane.xlu0 %156
    %v158 = vadd.f32 %v154, %v157
    %159 = vst.msk [vmem:[#allocation3] sm:$0xff] %vm152, %v158
    %v160 = vld [vmem:[#allocation4] sm:$0xff]
    %v161 = vmul.f32 %v143, %v143
    %162 = vadd.xlane.f32.xlu0 %v161
    %v163 = vpop.xlane.xlu0 %162
    %v164 = vadd.f32 %v160, %v163
    %165 = vst.msk [vmem:[#allocation4] sm:$0xff] %vm152, %v164
    // Predicated region
    $region30: #{tpu_custom_call.1} parent=1 // pred_check
      %p166 = pneg %p51
    $region31: #{tpu_custom_call.1} parent=1 // pred_check_branch
      %168 = sbr.rel (%p166) target = $region33
    $region32: #{tpu_custom_call.1} parent=1 // pred_region
      %v169 = vld [vmem:[#allocation3] sm:$0xff]
      %v170 = vld [vmem:[#allocation4] sm:$0xff]
      %v171 = vmul.f32 %v169, %v170
      %v172 = vmax.f32 %v171, 1e-20
      %v173 = vld [vmem:[#allocation2] sm:$0xff]
      %v174 = vrsqrt.pop %v172
      %v175 = vmul.f32 %v173, %v174
      %v176 = vsub.f32 0.0, %v175
      %177 = vst.msk [vmem:[%s3] sm:$0xff] %vm152, %v176
    $region33: #{tpu_custom_call.1} parent=1 // pred_fallthru
      _
    // Predicated region
    $region34: #{tpu_custom_call.1} parent=1 // pred_check
      _
    $region35: #{tpu_custom_call.1} parent=1 // pred_check_branch
      %179 = sbr.rel (0) target = $region37
    $region36: #{tpu_custom_call.1} parent=1 // pred_region
      _
    $region37: #{tpu_custom_call.1} parent=1 // pred_fallthru
      _
    // Predicated region
    $region38: #{tpu_custom_call.1} parent=1 // pred_check
      _
    $region39: #{tpu_custom_call.1} parent=1 // pred_check_branch
      %181 = sbr.rel (0) target = $region41
    $region40: #{tpu_custom_call.1} parent=1 // pred_region
      _
    $region41: #{tpu_custom_call.1} parent=1 // pred_fallthru
      _
    %182 = vsyncpa [#allocation6], 1
    %183 = vsyncpa [#allocation8], 1

</llo_original>
